<compile_context>
chip_gen: v7x
topology: tpu7x:2x2x1
jax: 0.10.0
libtpu: 0.0.40
codegen_flags: <defaults>
</compile_context>

<pallas_src>
import jax
import jax.numpy as jnp
from jax import lax
from jax.experimental import pallas as pl
from jax.experimental.pallas import tpu as pltpu


_CHUNK = 256  # spatial sub-chunk for the one-hot matmul (keeps temps ~2 vregs)


def _reg_cls_loss_kernel(tiles_ref, ntiles_ref,                 # scalar prefetch (SMEM)
                         feats_ref, ind_ref, tgt_ref, msk_ref,  # inputs (VMEM)
                         out_ref,                               # output (VMEM)
                         acc_ref):                              # scratch (VMEM)
    # tiles_ref  : (B, max_steps) int32   HW-tile id visited at grid step (b, j)
    # ntiles_ref : (B,)           int32   number of valid (object-bearing) tiles
    # feats_ref  : (1, C, THW)            feature tile (classes x spatial slice)
    # ind_ref    : (1, 1, K_pad)  int32   spatial indices into HW
    # tgt_ref    : (1, 1, K_pad)  int32   class labels in [0, C)
    # msk_ref    : (1, 1, K_pad)  float32 1.0 where object is valid, else 0.0
    # out_ref    : (1, 1, K_pad)  float32 per-object masked CE (written last step)
    # acc_ref    : (C, K_pad)     float32 gathered-logits accumulator
    b = pl.program_id(0)
    j = pl.program_id(1)
    n_steps = pl.num_programs(1)

    _, kpad = acc_ref.shape
    thw = feats_ref.shape[2]
    chunk = min(_CHUNK, thw)            # thw is always a multiple of chunk

    @pl.when(j == 0)
    def _():
        acc_ref[...] = jnp.zeros_like(acc_ref)

    # Only steps that map to a real object-bearing tile do work; padding steps
    # repeat the previous tile id (no extra DMA) and are skipped here.
    @pl.when(j < ntiles_ref[b])
    def _():
        base = tiles_ref[b, j] * thw                        # element offset of tile
        local = ind_ref[0] - base                           # (1, K_pad) tile-local idx
        # Chunk-invariant iota (review #1): offsets live in `local`, not the iota.
        t_iota = lax.broadcasted_iota(jnp.int32, (chunk, kpad), 0)
        for c0 in range(0, thw, chunk):                     # static, fully unrolled
            f_chunk = feats_ref[0, :, pl.ds(c0, chunk)]     # (C, chunk)
            onehot = (t_iota == (local - c0)).astype(f_chunk.dtype)  # (chunk, K_pad)
            # Exact gather: at most one 1.0 per column; f32 accumulate on the MXU.
            acc_ref[...] += jnp.dot(f_chunk, onehot,
                                    preferred_element_type=jnp.float32)

    @pl.when(j == n_steps - 1)
    def _():
        logits = acc_ref[...]                               # (C, K_pad) gathered logits
        tgt_row = tgt_ref[0]                                # (1, K_pad) int32
        msk_row = msk_ref[0]                                # (1, K_pad) f32

        # Numerically stable cross-entropy per object (class axis on sublanes).
        m = jnp.max(logits, axis=0, keepdims=True)
        lse = m + jnp.log(jnp.sum(jnp.exp(logits - m), axis=0, keepdims=True))
        c_iota = lax.broadcasted_iota(jnp.int32, logits.shape, 0)
        tgt_oh = (c_iota == tgt_row).astype(jnp.float32)
        picked = jnp.sum(logits * tgt_oh, axis=0, keepdims=True)

        # NOTE: padded K lanes (ind=0 / target=0) rely on the padded mask lanes
        # being exactly 0.0 to drop out of the loss (correctness concern #3).
        per_obj = (lse - picked) * msk_row
        out_ref[...] = per_obj.reshape(1, 1, kpad)


def _choose_hw_tile(hw):
    """Spatial tile size and padded HW (a multiple of the tile)."""
    hw_pad = ((hw + 127) // 128) * 128
    for cand in (512, 256, 128):
        if hw_pad % cand == 0:
            return cand, hw_pad
    return 128, hw_pad  # unreachable: 128 always divides hw_pad


def reg_cls_loss(output, mask, ind, target):
    """output: (B, C, H, W); mask: (B, K) bool; ind: (B, K) int; target: (B, K) int."""
    B, C, H, W = output.shape
    K = mask.shape[1]
    HW = H * W

    THW, HW_pad = _choose_hw_tile(HW)
    n_hw = HW_pad // THW

    # NCHW -> (B, C, HW): a pure reshape (no HBM transpose).  Pad HW so the
    # BlockSpec tiles exactly; padded positions are never selected (ind < HW).
    feats = output.reshape(B, C, HW)
    if HW_pad != HW:
        feats = jnp.pad(feats, ((0, 0), (0, 0), (0, HW_pad - HW)))

    # Lane-major, 128-padded object metadata (padded lanes carry mask == 0).
    K_pad = max(128, ((K + 127) // 128) * 128)

    def pad_k(x):
        return jnp.pad(x, ((0, 0), (0, K_pad - K)))

    ind_i32 = ind.astype(jnp.int32)
    ind_p = pad_k(ind_i32).reshape(B, 1, K_pad)
    tgt_p = pad_k(target.astype(jnp.int32)).reshape(B, 1, K_pad)
    msk_p = pad_k(mask.astype(jnp.float32)).reshape(B, 1, K_pad)

    # --- deduplicated, per-batch list of HW tiles that contain objects -------
    max_steps = min(K, n_hw)
    tile_ids = ind_i32 // THW                                         # (B, K)
    sorted_tiles = jnp.sort(tile_ids, axis=1)
    is_new = jnp.concatenate(
        [jnp.ones((B, 1), dtype=bool),
         sorted_tiles[:, 1:] != sorted_tiles[:, :-1]], axis=1)        # (B, K)
    num_tiles = jnp.sum(is_new.astype(jnp.int32), axis=1)             # (B,), >= 1
    # Stable argsort pushes the unique tile ids (ascending) to the front.
    order = jnp.argsort(jnp.logical_not(is_new).astype(jnp.int32),
                        axis=1, stable=True)
    compact = jnp.take_along_axis(sorted_tiles, order, axis=1)[:, :max_steps]
    last_id = jnp.take_along_axis(
        compact, jnp.clip(num_tiles - 1, 0, max_steps - 1)[:, None], axis=1)
    pos = jnp.arange(max_steps, dtype=jnp.int32)[None, :]
    # Padding steps repeat the last valid tile id so the already-resident block
    # is re-used (no DMA); the kernel skips their accumulation.
    tile_list = jnp.where(pos < num_tiles[:, None], compact, last_id).astype(jnp.int32)

    grid_spec = pltpu.PrefetchScalarGridSpec(
        num_scalar_prefetch=2,
        grid=(B, max_steps),                        # reduction (tile) axis last
        in_specs=[
            # Data-dependent spatial tile: only object-bearing tiles are fetched.
            pl.BlockSpec((1, C, THW),
                         lambda b, j, tiles, ntiles: (b, 0, tiles[b, j])),
            pl.BlockSpec((1, 1, K_pad), lambda b, j, tiles, ntiles: (b, 0, 0)),
            pl.BlockSpec((1, 1, K_pad), lambda b, j, tiles, ntiles: (b, 0, 0)),
            pl.BlockSpec((1, 1, K_pad), lambda b, j, tiles, ntiles: (b, 0, 0)),
        ],
        # Lane-dense per-batch partials; block index constant over the tile axis
        # (accumulator-output pattern) and distinct per b (batch parallelism).
        out_specs=pl.BlockSpec((1, 1, K_pad), lambda b, j, tiles, ntiles: (b, 0, 0)),
        scratch_shapes=[pltpu.VMEM((C, K_pad), jnp.float32)],
    )

    per_obj = pl.pallas_call(
        _reg_cls_loss_kernel,
        out_shape=jax.ShapeDtypeStruct((B, 1, K_pad), jnp.float32),
        grid_spec=grid_spec,
        compiler_params=pltpu.CompilerParams(
            dimension_semantics=("parallel", "arbitrary")),
    )(tile_list, num_tiles, feats, ind_p, tgt_p, msk_p)

    # Final reduction + normalisation in the wrapper (padded lanes are exact 0).
    num = mask.astype(jnp.float32).sum()
    return per_obj.sum() / (num + 0.0001)


def reg_cls_loss_ref(output, mask, ind, target):
    """Pure-JAX reference mirroring the PyTorch module."""
    B, C, H, W = output.shape
    feats = jnp.transpose(output, (0, 2, 3, 1)).reshape(B, H * W, C)
    pred = jnp.take_along_axis(feats, ind[:, :, None].astype(jnp.int32),
                               axis=1).astype(jnp.float32)         # (B, K, C)
    lse = jax.scipy.special.logsumexp(pred, axis=-1)                # (B, K)
    picked = jnp.take_along_axis(pred, target[:, :, None].astype(jnp.int32),
                                 axis=-1)[..., 0]                   # (B, K)
    ce = lse - picked
    m = mask.astype(jnp.float32)
    num = m.sum()
    return (ce * m).sum() / (num + 0.0001)


if __name__ == "__main__":
    key = jax.random.PRNGKey(0)
    B, C, H, W = 2, 4, 16, 16      # batch x dim(classes) x h x w
    K = 8                          # max_objects

    k1, k2, k3, k4 = jax.random.split(key, 4)
    output = jax.random.normal(k1, (B, C, H, W), dtype=jnp.float32)
    ind = jax.random.randint(k2, (B, K), 0, H * W, dtype=jnp.int32)
    target = jax.random.randint(k3, (B, K), 0, C, dtype=jnp.int32)
    mask = jax.random.bernoulli(k4, 0.6, (B, K))

    loss = jax.block_until_ready(reg_cls_loss(output, mask, ind, target))
    ref = jax.block_until_ready(reg_cls_loss_ref(output, mask, ind, target))

    assert jnp.allclose(loss, ref, rtol=1e-5, atol=1e-5), (loss, ref)
    print("KERNEL_OK")
</pallas_src>

<mosaic_0001>
module attributes {stable_mosaic.version = 11 : i64} {
  func.func @_reg_cls_loss_kernel(%arg0: i32, %arg1: i32, %arg2: memref<2x1xi32, #tpu.memory_space<smem>>, %arg3: memref<2xi32, #tpu.memory_space<smem>>, %arg4: memref<1x4x256xf32, #tpu.memory_space<vmem>>, %arg5: memref<1x1x128xi32, #tpu.memory_space<vmem>>, %arg6: memref<1x1x128xi32, #tpu.memory_space<vmem>>, %arg7: memref<1x1x128xf32, #tpu.memory_space<vmem>>, %arg8: memref<1x1x128xf32, #tpu.memory_space<vmem>>, %arg9: memref<4x128xf32, #tpu.memory_space<vmem>>) attributes {dimension_semantics = [#tpu.dimension_semantics<parallel>, #tpu.dimension_semantics<arbitrary>], iteration_bounds = array<i64: 2, 1>, scalar_prefetch = 2 : i64, scratch_operands = 1 : i64, tpu.core_type = #tpu.core_type<tc>, window_params = [{transform_indices = @transform_0, window_bounds = array<i64: 1, 4, 256>}, {transform_indices = @transform_1, window_bounds = array<i64: 1, 1, 128>}, {transform_indices = @transform_2, window_bounds = array<i64: 1, 1, 128>}, {transform_indices = @transform_3, window_bounds = array<i64: 1, 1, 128>}, {transform_indices = @transform_4, window_bounds = array<i64: 1, 1, 128>}]} {
    %c0_i32 = arith.constant 0 : i32
    %0 = arith.cmpi eq, %arg1, %c0_i32 : i32
    %1 = arith.extui %0 : i1 to i32
    %c0_i32_0 = arith.constant 0 : i32
    %2 = arith.cmpi ne, %1, %c0_i32_0 : i32
    scf.if %2 {
      %cst = arith.constant 0.000000e+00 : f32
      %11 = vector.broadcast %cst : f32 to vector<4x128xf32>
      %c0 = arith.constant 0 : index
      %c0_4 = arith.constant 0 : index
      %12 = vector.load %arg9[%c0, %c0_4] : memref<4x128xf32, #tpu.memory_space<vmem>>, vector<4x128xf32>
      tpu.vector_store %arg9[%c0, %c0_4], %11 {strides = array<i32>} : memref<4x128xf32, #tpu.memory_space<vmem>>, vector<4x128xf32>,
    } else {
    }
    %3 = arith.index_cast %arg0 : i32 to index
    %4 = memref.load %arg3[%3] : memref<2xi32, #tpu.memory_space<smem>>
    %5 = arith.cmpi slt, %arg1, %4 : i32
    %6 = arith.extui %5 : i1 to i32
    %c0_i32_1 = arith.constant 0 : i32
    %7 = arith.cmpi ne, %6, %c0_i32_1 : i32
    scf.if %7 {
      %11 = arith.index_cast %arg0 : i32 to index
      %12 = arith.index_cast %arg1 : i32 to index
      %13 = memref.load %arg2[%11, %12] : memref<2x1xi32, #tpu.memory_space<smem>>
      %c256_i32 = arith.constant 256 : i32
      %14 = arith.muli %13, %c256_i32 : i32
      %c0 = arith.constant 0 : index
      %c0_4 = arith.constant 0 : index
      %c0_5 = arith.constant 0 : index
      %15 = vector.load %arg5[%c0, %c0_4, %c0_5] : memref<1x1x128xi32, #tpu.memory_space<vmem>>, vector<1x1x128xi32>
      %16 = vector.shape_cast %15 : vector<1x1x128xi32> to vector<1x128xi32>
      %17 = vector.broadcast %14 : i32 to vector<1x128xi32>
      %18 = arith.subi %16, %17 : vector<1x128xi32>
      %19 = tpu.iota {dimensions = array<i32: 0>} : vector<256x128xi32>
      %c0_6 = arith.constant 0 : index
      %c0_7 = arith.constant 0 : index
      %c0_8 = arith.constant 0 : index
      %20 = vector.load %arg4[%c0_6, %c0_7, %c0_8] : memref<1x4x256xf32, #tpu.memory_space<vmem>>, vector<1x4x256xf32>
      %21 = vector.shape_cast %20 : vector<1x4x256xf32> to vector<4x256xf32>
      %c0_i32_9 = arith.constant 0 : i32
      %22 = vector.broadcast %c0_i32_9 : i32 to vector<1x128xi32>
      %23 = arith.subi %18, %22 : vector<1x128xi32>
      %24 = vector.broadcast %23 : vector<1x128xi32> to vector<256x128xi32>
      %25 = arith.cmpi eq, %19, %24 : vector<256x128xi32>
      %26 = arith.extui %25 : vector<256x128xi1> to vector<256x128xi32>
      %27 = arith.sitofp %26 : vector<256x128xi32> to vector<256x128xf32>
      %c0_10 = arith.constant 0 : index
      %c0_11 = arith.constant 0 : index
      %28 = vector.load %arg9[%c0_10, %c0_11] : memref<4x128xf32, #tpu.memory_space<vmem>>, vector<4x128xf32>
      %cst = arith.constant dense<0.000000e+00> : vector<4x128xf32>
      %29 = tpu.matmul %21, %27, %cst {dimension_numbers = #tpu.dot_dimension_numbers<[1], [0], [0], [1], [0, 0, 1, 1], [], []>} : vector<4x256xf32>, vector<256x128xf32>, vector<4x128xf32> -> vector<4x128xf32>
      %30 = arith.addf %28, %29 : vector<4x128xf32>
      %c0_12 = arith.constant 0 : index
      %c0_13 = arith.constant 0 : index
      %31 = vector.load %arg9[%c0_12, %c0_13] : memref<4x128xf32, #tpu.memory_space<vmem>>, vector<4x128xf32>
      tpu.vector_store %arg9[%c0_12, %c0_13], %30 {strides = array<i32>} : memref<4x128xf32, #tpu.memory_space<vmem>>, vector<4x128xf32>,
    } else {
    }
    %c0_i32_2 = arith.constant 0 : i32
    %8 = arith.cmpi eq, %arg1, %c0_i32_2 : i32
    %9 = arith.extui %8 : i1 to i32
    %c0_i32_3 = arith.constant 0 : i32
    %10 = arith.cmpi ne, %9, %c0_i32_3 : i32
    scf.if %10 {
      %c0 = arith.constant 0 : index
      %c0_4 = arith.constant 0 : index
      %11 = vector.load %arg9[%c0, %c0_4] : memref<4x128xf32, #tpu.memory_space<vmem>>, vector<4x128xf32>
      %c0_5 = arith.constant 0 : index
      %c0_6 = arith.constant 0 : index
      %c0_7 = arith.constant 0 : index
      %12 = vector.load %arg6[%c0_5, %c0_6, %c0_7] : memref<1x1x128xi32, #tpu.memory_space<vmem>>, vector<1x1x128xi32>
      %13 = vector.shape_cast %12 : vector<1x1x128xi32> to vector<1x128xi32>
      %c0_8 = arith.constant 0 : index
      %c0_9 = arith.constant 0 : index
      %c0_10 = arith.constant 0 : index
      %14 = vector.load %arg7[%c0_8, %c0_9, %c0_10] : memref<1x1x128xf32, #tpu.memory_space<vmem>>, vector<1x1x128xf32>
      %15 = vector.shape_cast %14 : vector<1x1x128xf32> to vector<1x128xf32>
      %cst = arith.constant dense<0xFF800000> : vector<128xf32>
      %16 = vector.multi_reduction <maximumf>, %11, %cst [0] : vector<4x128xf32> to vector<128xf32>
      %17 = vector.shape_cast %16 : vector<128xf32> to vector<1x128xf32>
      %18 = vector.broadcast %17 : vector<1x128xf32> to vector<4x128xf32>
      %19 = arith.subf %11, %18 : vector<4x128xf32>
      %20 = math.exp %19 : vector<4x128xf32>
      %cst_11 = arith.constant dense<0.000000e+00> : vector<128xf32>
      %21 = vector.multi_reduction <add>, %20, %cst_11 [0] : vector<4x128xf32> to vector<128xf32>
      %22 = vector.shape_cast %21 : vector<128xf32> to vector<1x128xf32>
      %23 = math.log %22 : vector<1x128xf32>
      %24 = arith.addf %17, %23 : vector<1x128xf32>
      %25 = tpu.iota {dimensions = array<i32: 0>} : vector<4x128xi32>
      %26 = vector.broadcast %13 : vector<1x128xi32> to vector<4x128xi32>
      %27 = arith.cmpi eq, %25, %26 : vector<4x128xi32>
      %28 = arith.extui %27 : vector<4x128xi1> to vector<4x128xi32>
      %29 = arith.sitofp %28 : vector<4x128xi32> to vector<4x128xf32>
      %30 = arith.mulf %11, %29 : vector<4x128xf32>
      %cst_12 = arith.constant dense<0.000000e+00> : vector<128xf32>
      %31 = vector.multi_reduction <add>, %30, %cst_12 [0] : vector<4x128xf32> to vector<128xf32>
      %32 = vector.shape_cast %31 : vector<128xf32> to vector<1x128xf32>
      %33 = arith.subf %24, %32 : vector<1x128xf32>
      %34 = arith.mulf %33, %15 : vector<1x128xf32>
      %35 = vector.shape_cast %34 : vector<1x128xf32> to vector<1x1x128xf32>
      %c0_13 = arith.constant 0 : index
      %c0_14 = arith.constant 0 : index
      %c0_15 = arith.constant 0 : index
      %36 = vector.load %arg8[%c0_13, %c0_14, %c0_15] : memref<1x1x128xf32, #tpu.memory_space<vmem>>, vector<1x1x128xf32>
      tpu.vector_store %arg8[%c0_13, %c0_14, %c0_15], %35 {strides = array<i32>} : memref<1x1x128xf32, #tpu.memory_space<vmem>>, vector<1x1x128xf32>,
    } else {
    }
    return
  }
  func.func @transform_0(%arg0: i32, %arg1: i32, %arg2: memref<2x1xi32, #tpu.memory_space<smem>>, %arg3: memref<2xi32, #tpu.memory_space<smem>>) -> (i32, i32, i32) {
    %0 = arith.index_cast %arg0 : i32 to index
    %1 = arith.index_cast %arg1 : i32 to index
    %2 = memref.load %arg2[%0, %1] : memref<2x1xi32, #tpu.memory_space<smem>>
    %c0_i32 = arith.constant 0 : i32
    %c0_i32_0 = arith.constant 0 : i32
    return %arg0, %c0_i32, %2 : i32, i32, i32
  }
  func.func @transform_1(%arg0: i32, %arg1: i32, %arg2: memref<2x1xi32, #tpu.memory_space<smem>>, %arg3: memref<2xi32, #tpu.memory_space<smem>>) -> (i32, i32, i32) {
    %c0_i32 = arith.constant 0 : i32
    %c0_i32_0 = arith.constant 0 : i32
    %c0_i32_1 = arith.constant 0 : i32
    return %arg0, %c0_i32, %c0_i32_0 : i32, i32, i32
  }
  func.func @transform_2(%arg0: i32, %arg1: i32, %arg2: memref<2x1xi32, #tpu.memory_space<smem>>, %arg3: memref<2xi32, #tpu.memory_space<smem>>) -> (i32, i32, i32) {
    %c0_i32 = arith.constant 0 : i32
    %c0_i32_0 = arith.constant 0 : i32
    %c0_i32_1 = arith.constant 0 : i32
    return %arg0, %c0_i32, %c0_i32_0 : i32, i32, i32
  }
  func.func @transform_3(%arg0: i32, %arg1: i32, %arg2: memref<2x1xi32, #tpu.memory_space<smem>>, %arg3: memref<2xi32, #tpu.memory_space<smem>>) -> (i32, i32, i32) {
    %c0_i32 = arith.constant 0 : i32
    %c0_i32_0 = arith.constant 0 : i32
    %c0_i32_1 = arith.constant 0 : i32
    return %arg0, %c0_i32, %c0_i32_0 : i32, i32, i32
  }
  func.func @transform_4(%arg0: i32, %arg1: i32, %arg2: memref<2x1xi32, #tpu.memory_space<smem>>, %arg3: memref<2xi32, #tpu.memory_space<smem>>) -> (i32, i32, i32) {
    %c0_i32 = arith.constant 0 : i32
    %c0_i32_0 = arith.constant 0 : i32
    %c0_i32_1 = arith.constant 0 : i32
    return %arg0, %c0_i32, %c0_i32_0 : i32, i32, i32
  }
}

</mosaic_0001>

<llo_original>
// kernel: tpu_custom_call.1
$region0: #{tpu_custom_call.1}
  #allocation0 [shape = 'u32[]', space=smem, size = 0x4, offset = 0x4, fixed_abs, tag = 'smem constant byte address 0x4 - core index']
  #allocation1 [shape = 'u32[144,128]{1,0:T(1,128)}', space=vmem, size = 0x12000, scoped, tag = 'internal scratch']
  #allocation2 [shape = 'f32[4,128]{1,0:T(4,128)}', space=vmem, size = 0x800, scoped, tag = 'scratch operand']
  #allocation3 [shape = 's32[1]{0}', space=sflag, size = 0x4, scoped, tag = 'scoped memory for tpu_custom_call.1']
  #allocation4 [shape = 'u8[1024]{0}', space=smem, size = 0x400, scoped, tag = 'prefetched SMEM operand 0']
  #allocation5 [shape = 'u8[512]{0}', space=smem, size = 0x200, scoped, tag = 'prefetched SMEM operand 1']
  %s0 = inlined_call_operand.vmem [shape: s32[2,1], index: 0, kind: input, shape index: {}]
  %s1 = inlined_call_operand.vmem [shape: s32[2], index: 1, kind: input, shape index: {}]
  %s2 = inlined_call_operand.hbm [shape: f32[2,4,256], index: 2, kind: input, shape index: {}]
  %s3 = inlined_call_operand.vmem [shape: s32[2,1,128], index: 3, kind: input, shape index: {}]
  %s4 = inlined_call_operand.vmem [shape: s32[2,1,128], index: 4, kind: input, shape index: {}]
  %s5 = inlined_call_operand.vmem [shape: f32[2,1,128], index: 5, kind: input, shape index: {}]
  %s6 = inlined_call_operand.hbm [shape: f32[2,1,128], index: 6, kind: output, shape index: {}]
  %s7 = sld [smem:[#allocation0]]
  $region65: #{tpu_custom_call.1} parent=0
    _
  %s9 = ssub.s32 1, %s7
  %s10 = scalar_select 0, %s9, %s7
  %s11 = sshll.u32 %s0, 4
  %s12 = int_to_ptr.vmem [resolvable:$true] %s11
  %14 = dma.vmem_to_smem %s12, 32, [#allocation4], [#allocation3]
  %s15 = sshll.u32 %s1, 4
  %s16 = int_to_ptr.vmem [resolvable:$true] %s15
  %18 = dma.vmem_to_smem %s16, 16, [#allocation5], [#allocation3]
  %19 = dma.done [#allocation3], 48
  %20 = sfence
  $region1: #{tpu_custom_call.1} parent=0
    #allocation6 [shape = 'u8[8192]{0}', space=vmem, size = 0x2000, scoped, tag = 'input window, operand 2']
    #allocation7 [shape = 's32[2]{0}', space=sflag, size = 0x8, scoped, tag = 'scoped memory for tpu_custom_call.1']
    #allocation8 [shape = 's32[2]{0}', space=sflag, size = 0x8, scoped, tag = 'scoped memory for tpu_custom_call.1']
    #allocation9 [shape = 'u8[1024]{0}', space=vmem, size = 0x400, scoped, tag = 'output window, operand 0']
    %21 = vsyncpa [#allocation7], 0
    %s22 = scalar_lea.sflag [#allocation7], 1
    %23 = vsyncpa %s22, 0
    %24 = vsyncpa [#allocation8], 0
    %s25 = scalar_lea.sflag [#allocation8], 1
    %26 = vsyncpa %s25, 0
    loop: start=0, step=1, limit=4
    $region2: #{tpu_custom_call.1} parent=1 // loop_pre_header
      _
    $region3: #{tpu_custom_call.1} parent=1 // loop_header
      %s28 = sphi 0, %s32
      %p29 = scmp.ge.s32.totalorder %s28, 4
      %s35 = sphi 0, %s47
      %s36 = sphi 0, %s43
      %s37 = sphi 0, %s35
      %s38 = sphi 0, %s36
      %s39 = sphi 0, %s37
      %s40 = sphi 0, %s38
      %s68 = sphi 0, %s70
      %s71 = sphi 0, %s68
      %s72 = sphi 0, %s71
      %s88 = sphi 0, %s72
      %s94 = sphi 0, %s96
      %s97 = sphi 0, %s94
      %s98 = sphi 0, %s97
      %s114 = sphi 0, %s98
      %s120 = sphi 0, %s122
      %s123 = sphi 0, %s120
      %s124 = sphi 0, %s123
      %s140 = sphi 0, %s124
      %s146 = sphi 0, %s148
      %s149 = sphi 0, %s146
      %s150 = sphi 0, %s149
      %s166 = sphi 0, %s150
      %s172 = sphi 0, %s174
      %s175 = sphi 0, %s172
      %s176 = sphi 0, %s175
      %s192 = sphi 0, %s176
    $region4: #{tpu_custom_call.1} parent=1 // loop_header_branch
      %31 = sbr.rel (%p29) target = $region8
    $region5: #{tpu_custom_call.1} parent=1 // loop_body
      %s33 = ssub.s32 %s28, 1
      %s34 = ssub.s32 %s28, 2
      %s41 = sadd.s32 1, %s36
      %p42 = scmp.ge.s32.totalorder %s41, 1
      %s43 = scalar_select %p42, 0, %s41
      %s44 = sadd.s32 1, %s35
      %s45 = scalar_select %p42, %s44, %s35
      %p46 = scmp.ge.s32.totalorder %s45, 2
      %s47 = scalar_select %p46, 0, %s45
      %s48 = sshra.s32 %s36, 7
      %s49 = sand.u32 %s36, 127
      %s50 = sadd.s32 %s48, %s35
      %s51 = smul.u32 %s50, 128
      %s52 = sshra.s32 %s36, 7
      %s53 = sand.u32 %s36, 127
      %s54 = sadd.s32 %s51, %s53
      %s55 = sld [smem:[#allocation4 + %s54]]
      %s56 = sshra.s32 %s43, 7
      %s57 = sand.u32 %s43, 127
      %s58 = sadd.s32 %s56, %s47
      %s59 = smul.u32 %s58, 128
      %s60 = sshra.s32 %s43, 7
      %s61 = sand.u32 %s43, 127
      %s62 = sadd.s32 %s59, %s61
      %s63 = sld [smem:[#allocation4 + %s62]]
      %s64 = ssub.s32 %s35, %s47
      %s65 = ssub.s32 %s55, %s63
      %s66 = sor.u32 %s64, %s65
      %p67 = scmp.eq.s32.totalorder %s66, 0
      %s69 = sadd.s32 %s68, 1
      %s70 = scalar_select %p67, %s68, %s69
      %p73 = pneg %p67
      %p74 = scmp.eq.s32.totalorder %s28, 1
      %p75 = por %p73, %p74
      %p76 = scmp.ne.s32.totalorder %s68, %s71
      %p77 = scmp.eq.s32.totalorder %s28, 0
      %p78 = por %p76, %p77
      %p79 = scmp.ne.s32.totalorder %s68, %s71
      %p80 = scmp.eq.s32.totalorder %s33, 1
      %p81 = por %p79, %p80
      %p82 = scmp.ne.s32.totalorder %s71, %s72
      %p83 = scmp.eq.s32.totalorder %s33, 0
      %p84 = por %p82, %p83
      %p85 = scmp.ne.s32.totalorder %s71, %s72
      %p86 = scmp.eq.s32.totalorder %s34, 1
      %p87 = por %p85, %p86
      %p89 = scmp.ne.s32.totalorder %s72, %s88
      %p90 = scmp.eq.s32.totalorder %s34, 0
      %p91 = por %p89, %p90
      %s92 = ssub.s32 %s35, %s47
      %p93 = scmp.eq.s32.totalorder %s92, 0
      %s95 = sadd.s32 %s94, 1
      %s96 = scalar_select %p93, %s94, %s95
      %p99 = pneg %p93
      %p100 = scmp.eq.s32.totalorder %s28, 1
      %p101 = por %p99, %p100
      %p102 = scmp.ne.s32.totalorder %s94, %s97
      %p103 = scmp.eq.s32.totalorder %s28, 0
      %p104 = por %p102, %p103
      %p105 = scmp.ne.s32.totalorder %s94, %s97
      %p106 = scmp.eq.s32.totalorder %s33, 1
      %p107 = por %p105, %p106
      %p108 = scmp.ne.s32.totalorder %s97, %s98
      %p109 = scmp.eq.s32.totalorder %s33, 0
      %p110 = por %p108, %p109
      %p111 = scmp.ne.s32.totalorder %s97, %s98
      %p112 = scmp.eq.s32.totalorder %s34, 1
      %p113 = por %p111, %p112
      %p115 = scmp.ne.s32.totalorder %s98, %s114
      %p116 = scmp.eq.s32.totalorder %s34, 0
      %p117 = por %p115, %p116
      %s118 = ssub.s32 %s35, %s47
      %p119 = scmp.eq.s32.totalorder %s118, 0
      %s121 = sadd.s32 %s120, 1
      %s122 = scalar_select %p119, %s120, %s121
      %p125 = pneg %p119
      %p126 = scmp.eq.s32.totalorder %s28, 1
      %p127 = por %p125, %p126
      %p128 = scmp.ne.s32.totalorder %s120, %s123
      %p129 = scmp.eq.s32.totalorder %s28, 0
      %p130 = por %p128, %p129
      %p131 = scmp.ne.s32.totalorder %s120, %s123
      %p132 = scmp.eq.s32.totalorder %s33, 1
      %p133 = por %p131, %p132
      %p134 = scmp.ne.s32.totalorder %s123, %s124
      %p135 = scmp.eq.s32.totalorder %s33, 0
      %p136 = por %p134, %p135
      %p137 = scmp.ne.s32.totalorder %s123, %s124
      %p138 = scmp.eq.s32.totalorder %s34, 1
      %p139 = por %p137, %p138
      %p141 = scmp.ne.s32.totalorder %s124, %s140
      %p142 = scmp.eq.s32.totalorder %s34, 0
      %p143 = por %p141, %p142
      %s144 = ssub.s32 %s35, %s47
      %p145 = scmp.eq.s32.totalorder %s144, 0
      %s147 = sadd.s32 %s146, 1
      %s148 = scalar_select %p145, %s146, %s147
      %p151 = pneg %p145
      %p152 = scmp.eq.s32.totalorder %s28, 1
      %p153 = por %p151, %p152
      %p154 = scmp.ne.s32.totalorder %s146, %s149
      %p155 = scmp.eq.s32.totalorder %s28, 0
      %p156 = por %p154, %p155
      %p157 = scmp.ne.s32.totalorder %s146, %s149
      %p158 = scmp.eq.s32.totalorder %s33, 1
      %p159 = por %p157, %p158
      %p160 = scmp.ne.s32.totalorder %s149, %s150
      %p161 = scmp.eq.s32.totalorder %s33, 0
      %p162 = por %p160, %p161
      %p163 = scmp.ne.s32.totalorder %s149, %s150
      %p164 = scmp.eq.s32.totalorder %s34, 1
      %p165 = por %p163, %p164
      %p167 = scmp.ne.s32.totalorder %s150, %s166
      %p168 = scmp.eq.s32.totalorder %s34, 0
      %p169 = por %p167, %p168
      %s170 = ssub.s32 %s35, %s47
      %p171 = scmp.eq.s32.totalorder %s170, 0
      %s173 = sadd.s32 %s172, 1
      %s174 = scalar_select %p171, %s172, %s173
      %p177 = pneg %p171
      %p178 = scmp.eq.s32.totalorder %s28, 1
      %p179 = por %p177, %p178
      %p180 = scmp.ne.s32.totalorder %s172, %s175
      %p181 = scmp.eq.s32.totalorder %s28, 0
      %p182 = por %p180, %p181
      %p183 = scmp.ne.s32.totalorder %s172, %s175
      %p184 = scmp.eq.s32.totalorder %s33, 1
      %p185 = por %p183, %p184
      %p186 = scmp.ne.s32.totalorder %s175, %s176
      %p187 = scmp.eq.s32.totalorder %s33, 0
      %p188 = por %p186, %p187
      %p189 = scmp.ne.s32.totalorder %s175, %s176
      %p190 = scmp.eq.s32.totalorder %s34, 1
      %p191 = por %p189, %p190
      %p193 = scmp.ne.s32.totalorder %s176, %s192
      %p194 = scmp.eq.s32.totalorder %s34, 0
      %p195 = por %p193, %p194
      %p196 = scmp.le.s32.totalorder 1, %s28
      %p197 = scmp.lt.s32.totalorder %s28, 3
      %p198 = pnand %p196, %p197
      %p199 = pneg %p198
      // Predicated region
      $region9: #{tpu_custom_call.1} parent=5 // pred_check
        _
      $region10: #{tpu_custom_call.1} parent=5 // pred_check_branch
        %201 = sbr.rel (%p198) target = $region12
      $region11: #{tpu_custom_call.1} parent=5 // pred_region
        %s202 = ssub.s32 %s28, 1
      $region12: #{tpu_custom_call.1} parent=5 // pred_fallthru
        _
      %p203 = scmp.lt.s32.totalorder %s28, 2
      // Predicated region
      $region13: #{tpu_custom_call.1} parent=5 // pred_check
        %p204 = pneg %p203
      $region14: #{tpu_custom_call.1} parent=5 // pred_check_branch
        %206 = sbr.rel (%p204) target = $region16
      $region15: #{tpu_custom_call.1} parent=5 // pred_region
        // Predicated region
        $region17: #{tpu_custom_call.1} parent=15 // pred_check
          %p207 = pneg %p78
        $region18: #{tpu_custom_call.1} parent=15 // pred_check_branch
          %209 = sbr.rel (%p207) target = $region20
        $region19: #{tpu_custom_call.1} parent=15 // pred_region
          %s210 = sand.u32 %s68, 1
          %s211 = scalar_lea.sflag [#allocation7], %s210
          %s212 = sand.u32 %s68, 1
          %s213 = smul.addr %s212, 8
          %s214 = scalar_lea.vmem [#allocation6], %s213
          %s215 = sshra.s32 %s36, 7
          %s216 = sand.u32 %s36, 127
          %s217 = sadd.s32 %s215, %s35
          %s218 = smul.u32 %s217, 128
          %s219 = sshra.s32 %s36, 7
          %s220 = sand.u32 %s36, 127
          %s221 = sadd.s32 %s218, %s220
          %s222 = sld [smem:[#allocation4 + %s221]]
          %s223 = smul.u32 2, %s222
          %s225 = ssub.s32 128, 128
          %226 = vsyncadd %s211, %s225
          %s227 = smul.addr %s35, 2
          %s228 = sadd.s32 %s223, %s227
          %s229 = smul.addr %s228, 64
          %s230 = scalar_lea.hbm %s2, %s229
          %s232 = sshll.u32 %s214, 4
          %s233 = int_to_ptr.vmem [resolvable:$true] %s232
          %235 = dma.hbm_to_vmem [thread:$0]  %s230, 128, %s233, %s211
        $region20: #{tpu_custom_call.1} parent=15 // pred_fallthru
          _
        // Predicated region
        $region21: #{tpu_custom_call.1} parent=15 // pred_check
          %p236 = pneg %p104
        $region22: #{tpu_custom_call.1} parent=15 // pred_check_branch
          %238 = sbr.rel (%p236) target = $region24
        $region23: #{tpu_custom_call.1} parent=15 // pred_region
          %p239 = scmp.lt.s32.totalorder %s35, 1
          %s240 = scalar_select %p239, %s35, 1
          %s241 = scalar_lea.vmem %s3, %s240
        $region24: #{tpu_custom_call.1} parent=15 // pred_fallthru
          _
        // Predicated region
        $region25: #{tpu_custom_call.1} parent=15 // pred_check
          %p242 = pneg %p130
        $region26: #{tpu_custom_call.1} parent=15 // pred_check_branch
          %244 = sbr.rel (%p242) target = $region28
        $region27: #{tpu_custom_call.1} parent=15 // pred_region
          %p245 = scmp.lt.s32.totalorder %s35, 1
          %s246 = scalar_select %p245, %s35, 1
          %s247 = scalar_lea.vmem %s4, %s246
        $region28: #{tpu_custom_call.1} parent=15 // pred_fallthru
          _
        // Predicated region
        $region29: #{tpu_custom_call.1} parent=15 // pred_check
          %p248 = pneg %p156
        $region30: #{tpu_custom_call.1} parent=15 // pred_check_branch
          %250 = sbr.rel (%p248) target = $region32
        $region31: #{tpu_custom_call.1} parent=15 // pred_region
          %p251 = scmp.lt.s32.totalorder %s35, 1
          %s252 = scalar_select %p251, %s35, 1
          %s253 = scalar_lea.vmem %s5, %s252
        $region32: #{tpu_custom_call.1} parent=15 // pred_fallthru
          _
      $region16: #{tpu_custom_call.1} parent=5 // pred_fallthru
        _
      %p254 = scmp.le.s32.totalorder 1, %s28
      %p255 = scmp.lt.s32.totalorder %s28, 3
      %p256 = pnand %p254, %p255
      %p257 = pneg %p256
      // Predicated region
      $region33: #{tpu_custom_call.1} parent=5 // pred_check
        _
      $region34: #{tpu_custom_call.1} parent=5 // pred_check_branch
        %259 = sbr.rel (%p256) target = $region36
      $region35: #{tpu_custom_call.1} parent=5 // pred_region
        %s260 = ssub.s32 %s28, 1
        %s261 = sand.u32 %s71, 1
        %s262 = scalar_lea.sflag [#allocation7], %s261
        %s263 = sand.u32 %s71, 1
        %s264 = smul.addr %s263, 8
        %s265 = scalar_lea.vmem [#allocation6], %s264
        // Predicated region
        $region37: #{tpu_custom_call.1} parent=35 // pred_check
          %p266 = pneg %p84
        $region38: #{tpu_custom_call.1} parent=35 // pred_check_branch
          %268 = sbr.rel (%p266) target = $region40
        $region39: #{tpu_custom_call.1} parent=35 // pred_region
          %269 = dma.done %s262, 128
        $region40: #{tpu_custom_call.1} parent=35 // pred_fallthru
          _
        %s270 = sand.u32 %s71, 1
        %s271 = scalar_lea.sflag [#allocation7], %s270
        %s272 = sand.u32 %s71, 1
        %s273 = smul.addr %s272, 8
        %s274 = scalar_lea.vmem [#allocation6], %s273
        %p275 = pneg %p84
        %p276 = pneg %p81
        %p277 = scmp.lt.s32.totalorder %s37, 1
        %s278 = scalar_select %p277, %s37, 1
        %s279 = scalar_lea.vmem %s3, %s278
        %p280 = pneg %p110
        %p281 = pneg %p107
        %p282 = scmp.lt.s32.totalorder %s37, 1
        %s283 = scalar_select %p282, %s37, 1
        %s284 = scalar_lea.vmem %s4, %s283
        %p285 = pneg %p136
        %p286 = pneg %p133
        %p287 = scmp.lt.s32.totalorder %s37, 1
        %s288 = scalar_select %p287, %s37, 1
        %s289 = scalar_lea.vmem %s5, %s288
        %p290 = pneg %p162
        %p291 = pneg %p159
        %p292 = pneg %p188
        %p293 = pneg %p185
        %s294 = sand.u32 %s175, 1
        %s295 = scalar_lea.sflag [#allocation8], %s294
        %s296 = sand.u32 %s175, 1
        %s297 = scalar_lea.vmem [#allocation9], %s296
        %s298 = sshra.s32 %s38, 7
        %s299 = sand.u32 %s38, 127
        %s300 = sadd.s32 %s298, %s37
        %s301 = smul.u32 %s300, 128
        %s302 = sshra.s32 %s38, 7
        %s303 = sand.u32 %s38, 127
        %s304 = sadd.s32 %s301, %s303
        %s305 = sld [smem:[#allocation4 + %s304]]
        %s306 = smul.u32 2, %s305
        %p307 = scmp.lt.s32.totalorder %s37, 1
        %s308 = scalar_select %p307, %s37, 1
        %s309 = scalar_lea.vmem %s3, %s308
        %p310 = scmp.lt.s32.totalorder %s37, 1
        %s311 = scalar_select %p310, %s37, 1
        %s312 = scalar_lea.vmem %s4, %s311
        %p313 = scmp.lt.s32.totalorder %s37, 1
        %s314 = scalar_select %p313, %s37, 1
        %s315 = scalar_lea.vmem %s5, %s314
        %p316 = scmp.eq.s32.totalorder %s38, 0
        // Predicated region
        $region41: #{tpu_custom_call.1} parent=35 // pred_check
          %p317 = pneg %p316
        $region42: #{tpu_custom_call.1} parent=35 // pred_check_branch
          %319 = sbr.rel (%p317) target = $region44
        $region43: #{tpu_custom_call.1} parent=35 // pred_region
          %320 = vst [vmem:[#allocation2] sm:$0xf] 0.0
        $region44: #{tpu_custom_call.1} parent=35 // pred_fallthru
          _
        %s321 = sld [smem:[#allocation5 + %s37]]
        %p322 = scmp.lt.s32.totalorder %s38, %s321
        // Predicated region
        $region45: #{tpu_custom_call.1} parent=35 // pred_check
          %p323 = pneg %p322
        $region46: #{tpu_custom_call.1} parent=35 // pred_check_branch
          %325 = sbr.rel (%p323) target = $region48
        $region47: #{tpu_custom_call.1} parent=35 // pred_region
          %s326 = sshra.s32 %s38, 7
          %s327 = sand.u32 %s38, 127
          %s328 = sadd.s32 %s326, %s37
          %s329 = smul.u32 %s328, 128
          %s330 = sshra.s32 %s38, 7
          %s331 = sand.u32 %s38, 127
          %s332 = sadd.s32 %s329, %s331
          %s333 = sld [smem:[#allocation4 + %s332]]
          %s334 = smul.u32 %s333, 256
          %v335 = vld [vmem:[%s309] sm:$0x1]
          %v336 = vstv %s334
          %v337 = vsub.s32 %v335, %v336
          %v338 = vlaneseq
          %v339 = vshrl.u32 %v338, 7
          %v340 = vadd.s32 %v339, 8
          %v341 = vadd.s32 %v339, 16
          %v342 = vadd.s32 %v339, 24
          %v343 = vadd.s32 %v339, 32
          %v344 = vadd.s32 %v339, 40
          %v345 = vadd.s32 %v339, 48
          %v346 = vadd.s32 %v339, 56
          %v347 = vadd.s32 %v339, 64
          %v348 = vadd.s32 %v339, 72
          %v349 = vadd.s32 %v339, 80
          %v350 = vadd.s32 %v339, 88
          %v351 = vadd.s32 %v339, 96
          %v352 = vadd.s32 %v339, 104
          %v353 = vadd.s32 %v339, 112
          %v354 = vadd.s32 %v339, 120
          %v355 = vadd.s32 %v339, 128
          %v356 = vadd.s32 %v339, 136
          %v357 = vadd.s32 %v339, 144
          %v358 = vadd.s32 %v339, 152
          %v359 = vadd.s32 %v339, 160
          %v360 = vadd.s32 %v339, 168
          %v361 = vadd.s32 %v339, 176
          %v362 = vadd.s32 %v339, 184
          %v363 = vadd.s32 %v339, 192
          %v364 = vadd.s32 %v339, 200
          %v365 = vadd.s32 %v339, 208
          %v366 = vadd.s32 %v339, 216
          %v367 = vadd.s32 %v339, 224
          %v368 = vadd.s32 %v339, 232
          %v369 = vadd.s32 %v339, 240
          %v370 = vadd.s32 %v339, 248
          %v371 = vld [vmem:[%s265] sm:$0xff]
          %v372 = vlaneseq
          %v373 = vshrl.u32 %v372, 7
          %v374 = vsub.s32 0, %v373
          %v375 = vrot.slane %v337, %v374
          %vm376 = vcmp.eq.s32.totalorder %v339, %v375
          %vm377 = vcmp.eq.s32.totalorder %v340, %v375
          %vm378 = vcmp.eq.s32.totalorder %v341, %v375
          %vm379 = vcmp.eq.s32.totalorder %v342, %v375
          %vm380 = vcmp.eq.s32.totalorder %v343, %v375
          %vm381 = vcmp.eq.s32.totalorder %v344, %v375
          %vm382 = vcmp.eq.s32.totalorder %v345, %v375
          %vm383 = vcmp.eq.s32.totalorder %v346, %v375
          %vm384 = vcmp.eq.s32.totalorder %v347, %v375
          %vm385 = vcmp.eq.s32.totalorder %v348, %v375
          %vm386 = vcmp.eq.s32.totalorder %v349, %v375
          %vm387 = vcmp.eq.s32.totalorder %v350, %v375
          %vm388 = vcmp.eq.s32.totalorder %v351, %v375
          %vm389 = vcmp.eq.s32.totalorder %v352, %v375
          %vm390 = vcmp.eq.s32.totalorder %v353, %v375
          %vm391 = vcmp.eq.s32.totalorder %v354, %v375
          %vm392 = vcmp.eq.s32.totalorder %v355, %v375
          %vm393 = vcmp.eq.s32.totalorder %v356, %v375
          %vm394 = vcmp.eq.s32.totalorder %v357, %v375
          %vm395 = vcmp.eq.s32.totalorder %v358, %v375
          %vm396 = vcmp.eq.s32.totalorder %v359, %v375
          %vm397 = vcmp.eq.s32.totalorder %v360, %v375
          %vm398 = vcmp.eq.s32.totalorder %v361, %v375
          %vm399 = vcmp.eq.s32.totalorder %v362, %v375
          %vm400 = vcmp.eq.s32.totalorder %v363, %v375
          %vm401 = vcmp.eq.s32.totalorder %v364, %v375
          %vm402 = vcmp.eq.s32.totalorder %v365, %v375
          %vm403 = vcmp.eq.s32.totalorder %v366, %v375
          %vm404 = vcmp.eq.s32.totalorder %v367, %v375
          %vm405 = vcmp.eq.s32.totalorder %v368, %v375
          %vm406 = vcmp.eq.s32.totalorder %v369, %v375
          %vm407 = vcmp.eq.s32.totalorder %v370, %v375
          %v408 = vsel %vm376, 1, 0
          %v409 = vsel %vm377, 1, 0
          %v410 = vsel %vm378, 1, 0
          %v411 = vsel %vm379, 1, 0
          %v412 = vsel %vm380, 1, 0
          %v413 = vsel %vm381, 1, 0
          %v414 = vsel %vm382, 1, 0
          %v415 = vsel %vm383, 1, 0
          %v416 = vsel %vm384, 1, 0
          %v417 = vsel %vm385, 1, 0
          %v418 = vsel %vm386, 1, 0
          %v419 = vsel %vm387, 1, 0
          %v420 = vsel %vm388, 1, 0
          %v421 = vsel %vm389, 1, 0
          %v422 = vsel %vm390, 1, 0
          %v423 = vsel %vm391, 1, 0
          %v424 = vsel %vm392, 1, 0
          %v425 = vsel %vm393, 1, 0
          %v426 = vsel %vm394, 1, 0
          %v427 = vsel %vm395, 1, 0
          %v428 = vsel %vm396, 1, 0
          %v429 = vsel %vm397, 1, 0
          %v430 = vsel %vm398, 1, 0
          %v431 = vsel %vm399, 1, 0
          %v432 = vsel %vm400, 1, 0
          %v433 = vsel %vm401, 1, 0
          %v434 = vsel %vm402, 1, 0
          %v435 = vsel %vm403, 1, 0
          %v436 = vsel %vm404, 1, 0
          %v437 = vsel %vm405, 1, 0
          %v438 = vsel %vm406, 1, 0
          %v439 = vsel %vm407, 1, 0
          %v440 = vcvt.s32.f32 %v408
          %v441 = vcvt.s32.f32 %v409
          %v442 = vcvt.s32.f32 %v410
          %v443 = vcvt.s32.f32 %v411
          %v444 = vcvt.s32.f32 %v412
          %v445 = vcvt.s32.f32 %v413
          %v446 = vcvt.s32.f32 %v414
          %v447 = vcvt.s32.f32 %v415
          %v448 = vcvt.s32.f32 %v416
          %v449 = vcvt.s32.f32 %v417
          %v450 = vcvt.s32.f32 %v418
          %v451 = vcvt.s32.f32 %v419
          %v452 = vcvt.s32.f32 %v420
          %v453 = vcvt.s32.f32 %v421
          %v454 = vcvt.s32.f32 %v422
          %v455 = vcvt.s32.f32 %v423
          %v456 = vcvt.s32.f32 %v424
          %v457 = vcvt.s32.f32 %v425
          %v458 = vcvt.s32.f32 %v426
          %v459 = vcvt.s32.f32 %v427
          %v460 = vcvt.s32.f32 %v428
          %v461 = vcvt.s32.f32 %v429
          %v462 = vcvt.s32.f32 %v430
          %v463 = vcvt.s32.f32 %v431
          %v464 = vcvt.s32.f32 %v432
          %v465 = vcvt.s32.f32 %v433
          %v466 = vcvt.s32.f32 %v434
          %v467 = vcvt.s32.f32 %v435
          %v468 = vcvt.s32.f32 %v436
          %v469 = vcvt.s32.f32 %v437
          %v470 = vcvt.s32.f32 %v438
          %v471 = vcvt.s32.f32 %v439
          %v472 = vld [vmem:[#allocation2] sm:$0xf]
          %v474 = vcombine.high %v371, %v371
          %476 = vmatprep.subr.mxu0 0.0
          %477 = vmatpush1.msra.mxu0 %v440
          %478 = vmatprep.subr.mxu0 0.0
          %479 = vmatpush1.msra.mxu0 %v441
          %480 = vmatprep.subr.mxu0 0.0
          %481 = vmatpush1.msra.mxu0 %v442
          %482 = vmatprep.subr.mxu0 0.0
          %483 = vmatpush1.msra.mxu0 %v443
          %484 = vmatprep.subr.mxu0 0.0
          %485 = vmatpush1.msra.mxu0 %v444
          %486 = vmatprep.subr.mxu0 0.0
          %487 = vmatpush1.msra.mxu0 %v445
          %488 = vmatprep.subr.mxu0 0.0
          %489 = vmatpush1.msra.mxu0 %v446
          %490 = vmatprep.subr.mxu0 0.0
          %491 = vmatpush1.msra.mxu0 %v447
          %492 = vmatprep.subr.mxu0 0.0
          %493 = vmatpush1.msra.mxu0 %v448
          %494 = vmatprep.subr.mxu0 0.0
          %495 = vmatpush1.msra.mxu0 %v449
          %496 = vmatprep.subr.mxu0 0.0
          %497 = vmatpush1.msra.mxu0 %v450
          %498 = vmatprep.subr.mxu0 0.0
          %499 = vmatpush1.msra.mxu0 %v451
          %500 = vmatprep.subr.mxu0 0.0
          %501 = vmatpush1.msra.mxu0 %v452
          %502 = vmatprep.subr.mxu0 0.0
          %503 = vmatpush1.msra.mxu0 %v453
          %504 = vmatprep.subr.mxu0 0.0
          %505 = vmatpush1.msra.mxu0 %v454
          %506 = vmatprep.subr.mxu0 0.0
          %507 = vmatpush1.msra.mxu0 %v455
          %508 = vmatprep.subr.mxu0 0.0
          %509 = vmatpush1.msra.mxu0 %v456
          %510 = vmatprep.subr.mxu0 0.0
          %511 = vmatpush1.msra.mxu0 %v457
          %512 = vmatprep.subr.mxu0 0.0
          %513 = vmatpush1.msra.mxu0 %v458
          %514 = vmatprep.subr.mxu0 0.0
          %515 = vmatpush1.msra.mxu0 %v459
          %516 = vmatprep.subr.mxu0 0.0
          %517 = vmatpush1.msra.mxu0 %v460
          %518 = vmatprep.subr.mxu0 0.0
          %519 = vmatpush1.msra.mxu0 %v461
          %520 = vmatprep.subr.mxu0 0.0
          %521 = vmatpush1.msra.mxu0 %v462
          %522 = vmatprep.subr.mxu0 0.0
          %523 = vmatpush1.msra.mxu0 %v463
          %524 = vmatprep.subr.mxu0 0.0
          %525 = vmatpush1.msra.mxu0 %v464
          %526 = vmatprep.subr.mxu0 0.0
          %527 = vmatpush1.msra.mxu0 %v465
          %528 = vmatprep.subr.mxu0 0.0
          %529 = vmatpush1.msra.mxu0 %v466
          %530 = vmatprep.subr.mxu0 0.0
          %531 = vmatpush1.msra.mxu0 %v467
          %532 = vmatprep.subr.mxu0 0.0
          %533 = vmatpush1.msra.mxu0 %v468
          %534 = vmatprep.subr.mxu0 0.0
          %535 = vmatpush1.msra.mxu0 %v469
          %536 = vmatprep.subr.mxu0 0.0
          %537 = vmatpush1.msra.mxu0 %v470
          %538 = vmatprep.subr.mxu0 0.0
          %539 = vmatpush1.msra.mxu0 %v471
          %540 = vmatprep.mubr.f32.mxu0 %v474
          %541 = vmatmul.mubr.f32.gmra.mrb[0].mxu0 %v371
          %v542 = vpop.f32.mrb[0].mxu0
          %v543 = vadd.f32 0.0, %v542
          %v544 = vpop.f32.mrb[0].mxu0
          %545 = vdwg.mxu0
          %v546 = vadd.f32 %v472, %v543
          %547 = vst [vmem:[#allocation2] sm:$0xf] %v546
        $region48: #{tpu_custom_call.1} parent=35 // pred_fallthru
          _
        // Predicated region
        $region49: #{tpu_custom_call.1} parent=35 // pred_check
          %p548 = pneg %p316
        $region50: #{tpu_custom_call.1} parent=35 // pred_check_branch
          %550 = sbr.rel (%p548) target = $region52
        $region51: #{tpu_custom_call.1} parent=35 // pred_region
          %v551 = vld [vmem:[#allocation2] sm:$0xf]
          %v552 = vld [vmem:[%s312] sm:$0x1]
          %v553 = vld [vmem:[%s315] sm:$0x1]
          %vm554 = vcmask 1043456
          %v555 = vsel %vm554, %v551, -inf
          %v556 = vrot.slane %v555, 4
          %v557 = vmax.f32 %v555, %v556
          %v558 = vrot.slane %v557, 2
          %v559 = vmax.f32 %v557, %v558
          %v560 = vrot.slane %v559, 1
          %v561 = vmax.f32 %v559, %v560
          %v562 = vsub.f32 %v551, %v561
          %v563 = vmul.f32 %v562, 1.442695
          %v564 = vpow.pop %v563
          %v565 = vsel %vm554, %v564, 0.0
          %v566 = vrot.slane %v565, 4
          %v567 = vadd.f32 %v565, %v566
          %v568 = vrot.slane %v567, 2
          %v569 = vadd.f32 %v567, %v568
          %v570 = vrot.slane %v569, 1
          %v571 = vadd.f32 %v569, %v570
          %v572 = vlog2.pop %v571
          %v573 = vmul.f32 %v572, 0.6931472
          %v574 = vadd.f32 %v561, %v573
          %v575 = vlaneseq
          %v576 = vshrl.u32 %v575, 7
          %v577 = vlaneseq
          %v578 = vshrl.u32 %v577, 7
          %v579 = vsub.s32 0, %v578
          %v580 = vrot.slane %v552, %v579
          %vm581 = vcmp.eq.s32.totalorder %v576, %v580
          %v582 = vsel %vm581, 1, 0
          %v583 = vcvt.s32.f32 %v582
          %v584 = vmul.f32 %v551, %v583
          %v585 = vsel %vm554, %v584, 0.0
          %v586 = vrot.slane %v585, 4
          %v587 = vadd.f32 %v585, %v586
          %v588 = vrot.slane %v587, 2
          %v589 = vadd.f32 %v587, %v588
          %v590 = vrot.slane %v589, 1
          %v591 = vadd.f32 %v589, %v590
          %v592 = vsub.f32 %v574, %v591
          %v593 = vmul.f32 %v592, %v553
          %594 = vst [vmem:[%s297] sm:$0x1] %v593
        $region52: #{tpu_custom_call.1} parent=35 // pred_fallthru
          _
        %s595 = sand.u32 %s175, 1
        %s596 = scalar_lea.sflag [#allocation8], %s595
        %s597 = sand.u32 %s175, 1
        %s598 = scalar_lea.vmem [#allocation9], %s597
        // Predicated region
        $region53: #{tpu_custom_call.1} parent=35 // pred_check
          %p599 = pneg %p185
        $region54: #{tpu_custom_call.1} parent=35 // pred_check_branch
          %601 = sbr.rel (%p599) target = $region56
        $region55: #{tpu_custom_call.1} parent=35 // pred_region
          %s603 = ssub.s32 16, 16
          %604 = vsyncadd %s596, %s603
          %s605 = smul.addr %s37, 16
          %s606 = scalar_lea.hbm %s6, %s605
          %s608 = sshll.u32 %s598, 4
          %s609 = int_to_ptr.vmem [resolvable:$true] %s608
          %611 = dma.vmem_to_hbm [thread:$0]  %s609, 16, %s606, %s596
        $region56: #{tpu_custom_call.1} parent=35 // pred_fallthru
          _
      $region36: #{tpu_custom_call.1} parent=5 // pred_fallthru
        _
      %p612 = scmp.le.s32.totalorder 2, %s28
      // Predicated region
      $region57: #{tpu_custom_call.1} parent=5 // pred_check
        %p613 = pneg %p612
      $region58: #{tpu_custom_call.1} parent=5 // pred_check_branch
        %615 = sbr.rel (%p613) target = $region60
      $region59: #{tpu_custom_call.1} parent=5 // pred_region
        %s616 = ssub.s32 %s28, 2
        // Predicated region
        $region61: #{tpu_custom_call.1} parent=59 // pred_check
          %p617 = pneg %p191
        $region62: #{tpu_custom_call.1} parent=59 // pred_check_branch
          %619 = sbr.rel (%p617) target = $region64
        $region63: #{tpu_custom_call.1} parent=59 // pred_region
          %s620 = sand.u32 %s176, 1
          %s621 = scalar_lea.sflag [#allocation8], %s620
          %s622 = sand.u32 %s176, 1
          %s623 = scalar_lea.vmem [#allocation9], %s622
          %624 = dma.done %s621, 16
        $region64: #{tpu_custom_call.1} parent=59 // pred_fallthru
          _
      $region60: #{tpu_custom_call.1} parent=5 // pred_fallthru
        _
    $region6: #{tpu_custom_call.1} parent=1 // loop_footer
      %s32 = sadd.s32 1, %s28
    $region7: #{tpu_custom_call.1} parent=1 // loop_footer_branch
      %27 = sbr.rel target = $region3
    $region8: #{tpu_custom_call.1} parent=1 // loop_exit
      _
    %625 = vsyncpa [#allocation7], 1
    %s626 = scalar_lea.sflag [#allocation7], 1
    %627 = vsyncpa %s626, 1
    %628 = vsyncpa [#allocation8], 1
    %s629 = scalar_lea.sflag [#allocation8], 1
    %630 = vsyncpa %s629, 1

</llo_original>
